<compile_context>
chip_gen: v5e
topology: v5e:2x2
jax: 0.10.0
libtpu: 0.0.40
codegen_flags: <defaults>
</compile_context>

<pallas_src>
import functools

import jax
import jax.numpy as jnp
from jax import lax
from jax.experimental import pallas as pl
from jax.experimental.pallas import tpu as pltpu


def _round_up(n, m):
    return ((n + m - 1) // m) * m


# ----------------------------------------------------------------------------
# Fused kernel: LayerNorm (biased var, eps inside rsqrt) -> affine ->
# Linear(din -> mlp_p) -> GELU -> Linear(mlp_p -> dout_p).  Row-local only.
# ----------------------------------------------------------------------------
def _prenorm_ff_kernel(x_ref, g_ref, b_ref, w1_ref, b1_ref, w2_ref, b2_ref,
                       o_ref, *, eps, inv_dim):
    x = x_ref[...].astype(jnp.float32)                       # (tm, din)

    # Single-pass LN stats: the two cross-lane reduces are independent.
    s1 = jnp.sum(x, axis=-1, keepdims=True)
    s2 = jnp.sum(x * x, axis=-1, keepdims=True)
    mean = s1 * inv_dim
    var = jnp.maximum(s2 * inv_dim - mean * mean, 0.0)       # clamp cancellation
    inv = lax.rsqrt(var + eps)                               # EUP rsqrt
    y = (x - mean) * inv * g_ref[...] + b_ref[...]           # gamma/beta f32

    # Up-projection + GELU, hidden stays on-chip.
    h = jnp.dot(y.astype(w1_ref.dtype), w1_ref[...],
                preferred_element_type=jnp.float32) + b1_ref[...]
    h = jax.nn.gelu(h, approximate=True)                     # tanh -> EUP

    # Down-projection to the (lane-padded) output, lane-dense store.
    out = jnp.dot(h.astype(w2_ref.dtype), w2_ref[...],
                  preferred_element_type=jnp.float32) + b2_ref[...]
    o_ref[...] = out.astype(o_ref.dtype)


def prenorm_ff_pallas(x2d, gamma, beta, w1t, b1, w2t, b2,
                      *, eps=1e-5, block_rows=2048):
    """Fused LayerNorm(din) + Linear(din->mlp_p) + GELU + Linear(mlp_p->dout_p)
    on a (rows, din) tensor.  mlp_p / dout_p are already 128-padded."""
    rows, din = x2d.shape
    mlp_p = w1t.shape[1]
    dout_p = w2t.shape[1]
    out_dtype = x2d.dtype
    itemsize = jnp.dtype(out_dtype).itemsize
    w_itemsize = jnp.dtype(w1t.dtype).itemsize

    # --- generation-aware VMEM budget -------------------------------------
    try:
        vmem_cap = int(pltpu.get_tpu_info().vmem_capacity_bytes)
    except Exception:
        vmem_cap = 64 * 1024 * 1024                  # conservative (v7x per-TC)
    budget = min(vmem_cap // 2, 48 * 1024 * 1024)    # working-set budget
    vmem_limit = int(min(vmem_cap * 3 // 4, 100 * 1024 * 1024))

    # Resident inputs are still double-buffered by BlockSpec -> count 2x.
    resident = 2 * ((din * mlp_p + mlp_p * dout_p) * w_itemsize
                    + (2 * din + mlp_p + dout_p) * 4)
    # Per-row working set: double-buffered x/out tiles + f32 on-chip temps
    # (x, y, h, gelu(h), out) inside the fused body.
    per_row = 2 * (din + dout_p) * itemsize + (2 * din + 2 * mlp_p + dout_p) * 4

    # --- row tile: multiple of 8 sublanes ----------------------------------
    tm = max(8, min(int(block_rows), _round_up(rows, 8)))
    tm = _round_up(tm, 8)
    if rows >= 32:
        # Keep >= 4 row tiles so both v7x TensorCores get work ("parallel").
        tm = min(tm, max(8, _round_up(-(-rows // 4), 8)))
    while tm > 8 and resident + tm * per_row > budget:
        tm //= 2
    tm = max(8, (tm // 8) * 8)

    # No row padding: boundary blocks are masked on write; LN + matmuls are
    # strictly row-local, so garbage boundary rows never touch valid rows.
    grid = (pl.cdiv(rows, tm),)

    cost = pl.CostEstimate(
        flops=int(2 * rows * (din * mlp_p + mlp_p * dout_p) + 10 * rows * din),
        transcendentals=int(rows * (1 + mlp_p)),
        bytes_accessed=int(rows * (din + dout_p) * itemsize
                           + (din * mlp_p + mlp_p * dout_p) * w_itemsize),
    )

    return pl.pallas_call(
        functools.partial(_prenorm_ff_kernel, eps=eps, inv_dim=1.0 / din),
        out_shape=jax.ShapeDtypeStruct((rows, dout_p), out_dtype),
        grid_spec=pltpu.PrefetchScalarGridSpec(
            num_scalar_prefetch=0,
            grid=grid,
            in_specs=[
                pl.BlockSpec((tm, din), lambda i: (i, 0)),        # x (pipelined)
                pl.BlockSpec((1, din), lambda i: (0, 0)),         # gamma
                pl.BlockSpec((1, din), lambda i: (0, 0)),         # beta
                pl.BlockSpec((din, mlp_p), lambda i: (0, 0)),     # W1^T (resident)
                pl.BlockSpec((1, mlp_p), lambda i: (0, 0)),       # b1
                pl.BlockSpec((mlp_p, dout_p), lambda i: (0, 0)),  # W2^T (resident)
                pl.BlockSpec((1, dout_p), lambda i: (0, 0)),      # b2
            ],
            out_specs=pl.BlockSpec((tm, dout_p), lambda i: (i, 0)),
        ),
        compiler_params=pltpu.CompilerParams(
            dimension_semantics=("parallel",),
            vmem_limit_bytes=vmem_limit),
        cost_estimate=cost,
    )(x2d, gamma, beta, w1t, b1, w2t, b2)


# ----------------------------------------------------------------------------
# PreNorm(dim, FeedForward(dim, mlp_dim)) module, fully fused.
# ----------------------------------------------------------------------------
class PreNormFeedForwardPallas:
    def __init__(self, dim, mlp_dim, w1, b1, w2, b2, gamma=None, beta=None,
                 eps=1e-5, block_rows=2048, use_bf16_matmul=False):
        self.dim = dim
        self.mlp_dim = mlp_dim
        self.eps = eps
        self.block_rows = block_rows

        # Lane-dense padding: hidden and output feature dims to 128-multiples.
        self.mlp_p = _round_up(mlp_dim, 128)
        self.dout_p = _round_up(dim, 128)

        mxu_dtype = jnp.bfloat16 if use_bf16_matmul else jnp.float32

        w1 = jnp.asarray(w1, jnp.float32)          # (mlp_dim, dim) PyTorch layout
        w2 = jnp.asarray(w2, jnp.float32)          # (dim, mlp_dim)
        b1 = jnp.asarray(b1, jnp.float32)
        b2 = jnp.asarray(b2, jnp.float32)

        # Pre-transpose, zero-pad and pre-cast ONCE at init.
        w1t = jnp.zeros((dim, self.mlp_p), jnp.float32).at[:, :mlp_dim].set(w1.T)
        w2t = jnp.zeros((self.mlp_p, self.dout_p), jnp.float32) \
                 .at[:mlp_dim, :dim].set(w2.T)
        self.w1t = w1t.astype(mxu_dtype)
        self.w2t = w2t.astype(mxu_dtype)
        self.b1 = jnp.zeros((1, self.mlp_p), jnp.float32).at[:, :mlp_dim].set(b1)
        self.b2 = jnp.zeros((1, self.dout_p), jnp.float32).at[:, :dim].set(b2)

        # nn.LayerNorm default init: weight=1, bias=0.
        g = jnp.ones((dim,), jnp.float32) if gamma is None \
            else jnp.asarray(gamma, jnp.float32)
        bt = jnp.zeros((dim,), jnp.float32) if beta is None \
            else jnp.asarray(beta, jnp.float32)
        self.gamma = g.reshape(1, dim)
        self.beta = bt.reshape(1, dim)

    def __call__(self, x, block_rows=None, keep_padded=False):
        # x: (batch, seq, dim)
        b, s, d = x.shape
        out2d = prenorm_ff_pallas(
            x.reshape(b * s, d), self.gamma, self.beta,
            self.w1t, self.b1, self.w2t, self.b2,
            eps=self.eps,
            block_rows=self.block_rows if block_rows is None else block_rows)
        if keep_padded:
            # For chaining into another Pallas kernel: stay lane-dense.
            return out2d.reshape(b, s, self.dout_p)
        return out2d[:, :self.dim].reshape(b, s, self.dim)


if __name__ == "__main__":
    key = jax.random.PRNGKey(0)
    batch, seq, dim, mlp_dim = 2, 8, 32, 128

    kx, k1, k2, k3, k4, kg, kb = jax.random.split(key, 7)
    x = jax.random.normal(kx, (batch, seq, dim), jnp.float32)
    w1 = jax.random.normal(k1, (mlp_dim, dim), jnp.float32) * 0.02
    b1 = jax.random.normal(k2, (mlp_dim,), jnp.float32) * 0.02
    w2 = jax.random.normal(k3, (dim, mlp_dim), jnp.float32) * 0.02
    b2 = jax.random.normal(k4, (dim,), jnp.float32) * 0.02
    gamma = 1.0 + 0.1 * jax.random.normal(kg, (dim,), jnp.float32)
    beta = 0.1 * jax.random.normal(kb, (dim,), jnp.float32)

    module = PreNormFeedForwardPallas(dim, mlp_dim, w1, b1, w2, b2, gamma, beta)

    def ref_fn(xin):
        mean = jnp.mean(xin, axis=-1, keepdims=True)
        var = jnp.mean((xin - mean) ** 2, axis=-1, keepdims=True)
        normed = (xin - mean) / jnp.sqrt(var + 1e-5) * gamma + beta
        h = jnp.einsum("bsd,hd->bsh", normed, w1) + b1
        h = jax.nn.gelu(h, approximate=True)
        return jnp.einsum("bsh,oh->bso", h, w2) + b2

    # Check 1: single-tile path.
    out = module(x)
    jax.block_until_ready(out)
    ref = ref_fn(x)
    assert out.shape == (batch, seq, dim)
    assert jnp.allclose(out, ref, atol=1e-3, rtol=1e-3), \
        float(jnp.max(jnp.abs(out - ref)))

    # Check 2: multi-tile + masked boundary block (rows=15 with an 8-row tile).
    x2 = jax.random.normal(jax.random.PRNGKey(1), (3, 5, dim), jnp.float32)
    out2 = module(x2, block_rows=8)
    jax.block_until_ready(out2)
    ref2 = ref_fn(x2)
    assert out2.shape == (3, 5, dim)
    assert jnp.allclose(out2, ref2, atol=1e-3, rtol=1e-3), \
        float(jnp.max(jnp.abs(out2 - ref2)))

    print("KERNEL_OK")
</pallas_src>

<mosaic_0001>
module attributes {stable_mosaic.version = 11 : i64} {
  func.func @_prenorm_ff_kernel(%arg0: i32, %arg1: memref<16x32xf32, #tpu.memory_space<vmem>>, %arg2: memref<1x32xf32, #tpu.memory_space<vmem>>, %arg3: memref<1x32xf32, #tpu.memory_space<vmem>>, %arg4: memref<32x128xf32, #tpu.memory_space<vmem>>, %arg5: memref<1x128xf32, #tpu.memory_space<vmem>>, %arg6: memref<128x128xf32, #tpu.memory_space<vmem>>, %arg7: memref<1x128xf32, #tpu.memory_space<vmem>>, %arg8: memref<16x128xf32, #tpu.memory_space<vmem>>) attributes {dimension_semantics = [#tpu.dimension_semantics<parallel>], iteration_bounds = array<i64: 1>, scalar_prefetch = 0 : i64, scratch_operands = 0 : i64, tpu.core_type = #tpu.core_type<tc>, window_params = [{transform_indices = @transform_0, window_bounds = array<i64: 16, 32>}, {pipeline_mode = #tpu.pipeline_mode<synchronous>, transform_indices = @transform_1, window_bounds = array<i64: 1, 32>}, {pipeline_mode = #tpu.pipeline_mode<synchronous>, transform_indices = @transform_2, window_bounds = array<i64: 1, 32>}, {pipeline_mode = #tpu.pipeline_mode<synchronous>, transform_indices = @transform_3, window_bounds = array<i64: 32, 128>}, {pipeline_mode = #tpu.pipeline_mode<synchronous>, transform_indices = @transform_4, window_bounds = array<i64: 1, 128>}, {pipeline_mode = #tpu.pipeline_mode<synchronous>, transform_indices = @transform_5, window_bounds = array<i64: 128, 128>}, {pipeline_mode = #tpu.pipeline_mode<synchronous>, transform_indices = @transform_6, window_bounds = array<i64: 1, 128>}, {transform_indices = @transform_7, window_bounds = array<i64: 16, 128>}]} {
    %c0 = arith.constant 0 : index
    %c0_0 = arith.constant 0 : index
    %0 = vector.load %arg1[%c0, %c0_0] : memref<16x32xf32, #tpu.memory_space<vmem>>, vector<16x32xf32>
    %cst = arith.constant dense<0.000000e+00> : vector<16xf32>
    %1 = vector.multi_reduction <add>, %0, %cst [1] : vector<16x32xf32> to vector<16xf32>
    %2 = vector.shape_cast %1 : vector<16xf32> to vector<16x1xf32>
    %3 = arith.mulf %0, %0 : vector<16x32xf32>
    %cst_1 = arith.constant dense<0.000000e+00> : vector<16xf32>
    %4 = vector.multi_reduction <add>, %3, %cst_1 [1] : vector<16x32xf32> to vector<16xf32>
    %5 = vector.shape_cast %4 : vector<16xf32> to vector<16x1xf32>
    %cst_2 = arith.constant 3.125000e-02 : f32
    %6 = vector.broadcast %cst_2 : f32 to vector<16x1xf32>
    %7 = arith.mulf %2, %6 : vector<16x1xf32>
    %cst_3 = arith.constant 3.125000e-02 : f32
    %8 = vector.broadcast %cst_3 : f32 to vector<16x1xf32>
    %9 = arith.mulf %5, %8 : vector<16x1xf32>
    %10 = arith.mulf %7, %7 : vector<16x1xf32>
    %11 = arith.subf %9, %10 : vector<16x1xf32>
    %cst_4 = arith.constant 0.000000e+00 : f32
    %12 = vector.broadcast %cst_4 : f32 to vector<16x1xf32>
    %13 = arith.maximumf %11, %12 : vector<16x1xf32>
    %cst_5 = arith.constant 9.99999974E-6 : f32
    %14 = vector.broadcast %cst_5 : f32 to vector<16x1xf32>
    %15 = arith.addf %13, %14 : vector<16x1xf32>
    %16 = math.rsqrt %15 : vector<16x1xf32>
    %17 = vector.broadcast %7 : vector<16x1xf32> to vector<16x32xf32>
    %18 = arith.subf %0, %17 : vector<16x32xf32>
    %19 = vector.broadcast %16 : vector<16x1xf32> to vector<16x32xf32>
    %20 = arith.mulf %18, %19 : vector<16x32xf32>
    %c0_6 = arith.constant 0 : index
    %c0_7 = arith.constant 0 : index
    %21 = vector.load %arg2[%c0_6, %c0_7] : memref<1x32xf32, #tpu.memory_space<vmem>>, vector<1x32xf32>
    %22 = vector.broadcast %21 : vector<1x32xf32> to vector<16x32xf32>
    %23 = arith.mulf %20, %22 : vector<16x32xf32>
    %c0_8 = arith.constant 0 : index
    %c0_9 = arith.constant 0 : index
    %24 = vector.load %arg3[%c0_8, %c0_9] : memref<1x32xf32, #tpu.memory_space<vmem>>, vector<1x32xf32>
    %25 = vector.broadcast %24 : vector<1x32xf32> to vector<16x32xf32>
    %26 = arith.addf %23, %25 : vector<16x32xf32>
    %c0_10 = arith.constant 0 : index
    %c0_11 = arith.constant 0 : index
    %27 = vector.load %arg4[%c0_10, %c0_11] : memref<32x128xf32, #tpu.memory_space<vmem>>, vector<32x128xf32>
    %cst_12 = arith.constant dense<0.000000e+00> : vector<16x128xf32>
    %28 = tpu.matmul %26, %27, %cst_12 {dimension_numbers = #tpu.dot_dimension_numbers<[1], [0], [0], [1], [0, 0, 1, 1], [], []>} : vector<16x32xf32>, vector<32x128xf32>, vector<16x128xf32> -> vector<16x128xf32>
    %c0_13 = arith.constant 0 : index
    %c0_14 = arith.constant 0 : index
    %29 = vector.load %arg5[%c0_13, %c0_14] : memref<1x128xf32, #tpu.memory_space<vmem>>, vector<1x128xf32>
    %30 = vector.broadcast %29 : vector<1x128xf32> to vector<16x128xf32>
    %31 = arith.addf %28, %30 : vector<16x128xf32>
    %32 = arith.mulf %31, %31 : vector<16x128xf32>
    %33 = arith.mulf %31, %32 : vector<16x128xf32>
    %cst_15 = arith.constant 4.471500e-02 : f32
    %34 = vector.broadcast %cst_15 : f32 to vector<16x128xf32>
    %35 = arith.mulf %34, %33 : vector<16x128xf32>
    %36 = arith.addf %31, %35 : vector<16x128xf32>
    %cst_16 = arith.constant 0.797884583 : f32
    %37 = vector.broadcast %cst_16 : f32 to vector<16x128xf32>
    %38 = arith.mulf %37, %36 : vector<16x128xf32>
    %39 = math.tanh %38 : vector<16x128xf32>
    %cst_17 = arith.constant 1.000000e+00 : f32
    %40 = vector.broadcast %cst_17 : f32 to vector<16x128xf32>
    %41 = arith.addf %40, %39 : vector<16x128xf32>
    %cst_18 = arith.constant 5.000000e-01 : f32
    %42 = vector.broadcast %cst_18 : f32 to vector<16x128xf32>
    %43 = arith.mulf %42, %41 : vector<16x128xf32>
    %44 = arith.mulf %31, %43 : vector<16x128xf32>
    %c0_19 = arith.constant 0 : index
    %c0_20 = arith.constant 0 : index
    %45 = vector.load %arg6[%c0_19, %c0_20] : memref<128x128xf32, #tpu.memory_space<vmem>>, vector<128x128xf32>
    %cst_21 = arith.constant dense<0.000000e+00> : vector<16x128xf32>
    %46 = tpu.matmul %44, %45, %cst_21 {dimension_numbers = #tpu.dot_dimension_numbers<[1], [0], [0], [1], [0, 0, 1, 1], [], []>} : vector<16x128xf32>, vector<128x128xf32>, vector<16x128xf32> -> vector<16x128xf32>
    %c0_22 = arith.constant 0 : index
    %c0_23 = arith.constant 0 : index
    %47 = vector.load %arg7[%c0_22, %c0_23] : memref<1x128xf32, #tpu.memory_space<vmem>>, vector<1x128xf32>
    %48 = vector.broadcast %47 : vector<1x128xf32> to vector<16x128xf32>
    %49 = arith.addf %46, %48 : vector<16x128xf32>
    %c0_24 = arith.constant 0 : index
    %c0_25 = arith.constant 0 : index
    %50 = vector.load %arg8[%c0_24, %c0_25] : memref<16x128xf32, #tpu.memory_space<vmem>>, vector<16x128xf32>
    tpu.vector_store %arg8[%c0_24, %c0_25], %49 {strides = array<i32>} : memref<16x128xf32, #tpu.memory_space<vmem>>, vector<16x128xf32>,
    return
  }
  func.func @transform_0(%arg0: i32) -> (i32, i32) {
    %c0_i32 = arith.constant 0 : i32
    %c0_i32_0 = arith.constant 0 : i32
    return %arg0, %c0_i32 : i32, i32
  }
  func.func @transform_1(%arg0: i32) -> (i32, i32) {
    %c0_i32 = arith.constant 0 : i32
    %c0_i32_0 = arith.constant 0 : i32
    %c0_i32_1 = arith.constant 0 : i32
    return %c0_i32, %c0_i32_0 : i32, i32
  }
  func.func @transform_2(%arg0: i32) -> (i32, i32) {
    %c0_i32 = arith.constant 0 : i32
    %c0_i32_0 = arith.constant 0 : i32
    %c0_i32_1 = arith.constant 0 : i32
    return %c0_i32, %c0_i32_0 : i32, i32
  }
  func.func @transform_3(%arg0: i32) -> (i32, i32) {
    %c0_i32 = arith.constant 0 : i32
    %c0_i32_0 = arith.constant 0 : i32
    %c0_i32_1 = arith.constant 0 : i32
    return %c0_i32, %c0_i32_0 : i32, i32
  }
  func.func @transform_4(%arg0: i32) -> (i32, i32) {
    %c0_i32 = arith.constant 0 : i32
    %c0_i32_0 = arith.constant 0 : i32
    %c0_i32_1 = arith.constant 0 : i32
    return %c0_i32, %c0_i32_0 : i32, i32
  }
  func.func @transform_5(%arg0: i32) -> (i32, i32) {
    %c0_i32 = arith.constant 0 : i32
    %c0_i32_0 = arith.constant 0 : i32
    %c0_i32_1 = arith.constant 0 : i32
    return %c0_i32, %c0_i32_0 : i32, i32
  }
  func.func @transform_6(%arg0: i32) -> (i32, i32) {
    %c0_i32 = arith.constant 0 : i32
    %c0_i32_0 = arith.constant 0 : i32
    %c0_i32_1 = arith.constant 0 : i32
    return %c0_i32, %c0_i32_0 : i32, i32
  }
  func.func @transform_7(%arg0: i32) -> (i32, i32) {
    %c0_i32 = arith.constant 0 : i32
    %c0_i32_0 = arith.constant 0 : i32
    return %arg0, %c0_i32 : i32, i32
  }
}

</mosaic_0001>

<llo_original>
// kernel: tpu_custom_call.1
$region0: #{tpu_custom_call.1}
  #allocation0 [shape = 'u32[]', space=smem, size = 0x4, offset = 0x4, fixed_abs, tag = 'smem constant byte address 0x4 - core index']
  #allocation1 [shape = 'u32[72,128]{1,0:T(1,128)}', space=vmem, size = 0x9000, scoped, tag = 'internal scratch']
  %s0 = inlined_call_operand.hbm [shape: f32[16,32], index: 0, kind: input, shape index: {}]
  %s1 = inlined_call_operand.hbm [shape: f32[1,32], index: 1, kind: input, shape index: {}]
  %s2 = inlined_call_operand.vmem [shape: f32[1,32], index: 2, kind: input, shape index: {}]
  %s3 = inlined_call_operand.hbm [shape: f32[32,128], index: 3, kind: input, shape index: {}]
  %s4 = inlined_call_operand.vmem [shape: f32[1,128], index: 4, kind: input, shape index: {}]
  %s5 = inlined_call_operand.hbm [shape: f32[128,128], index: 5, kind: input, shape index: {}]
  %s6 = inlined_call_operand.vmem [shape: f32[1,128], index: 6, kind: input, shape index: {}]
  %s7 = inlined_call_operand.hbm [shape: f32[16,128], index: 7, kind: output, shape index: {}]
  %s8 = sld [smem:[#allocation0]]
  $region54: #{tpu_custom_call.1} parent=0
    _
  %s10 = ssub.s32 1, %s8
  %s11 = scalar_select 0, %s10, %s8
  $region1: #{tpu_custom_call.1} parent=0
    #allocation2 [shape = 'u8[8192]{0}', space=vmem, size = 0x2000, scoped, tag = 'input window, operand 0, single buffered']
    #allocation3 [shape = 's32[1]{0}', space=sflag, size = 0x4, scoped, tag = 'scoped memory for tpu_custom_call.1']
    #allocation4 [shape = 's32[1]{0}', space=sflag, size = 0x4, scoped, tag = 'scoped memory for tpu_custom_call.1']
    #allocation5 [shape = 'u8[512]{0}', space=vmem, size = 0x400, scoped, tag = 'input window, operand 1, single buffered']
    #allocation6 [shape = 's32[1]{0}', space=sflag, size = 0x4, scoped, tag = 'scoped memory for tpu_custom_call.1']
    #allocation7 [shape = 'u8[16384]{0}', space=vmem, size = 0x4000, scoped, tag = 'input window, operand 3, single buffered']
    #allocation8 [shape = 'u8[65536]{0}', space=vmem, size = 0x10000, scoped, tag = 'input window, operand 5, single buffered']
    #allocation9 [shape = 's32[1]{0}', space=sflag, size = 0x4, scoped, tag = 'scoped memory for tpu_custom_call.1']
    #allocation10 [shape = 'u8[8192]{0}', space=vmem, size = 0x2000, scoped, tag = 'output window, operand 0, single buffered']
    %12 = vsyncpa [#allocation3], 0
    %13 = vsyncpa [#allocation6], 0
    %14 = vsyncpa [#allocation9], 0
    %15 = vsyncpa [#allocation4], 0
    // Predicated region
    $region2: #{tpu_custom_call.1} parent=1 // pred_check
      _
    $region3: #{tpu_custom_call.1} parent=1 // pred_check_branch
      %17 = sbr.rel (0) target = $region5
    $region4: #{tpu_custom_call.1} parent=1 // pred_region
      %19 = vsyncadd [#allocation3], 0
      %s20 = sshll.u32 %s0, 4
      %s21 = int_to_ptr.hbm [resolvable:$true] %s20
      %s22 = sshll.u32 [#allocation2], 4
      %s23 = int_to_ptr.vmem [resolvable:$true] %s22
      %28 = dma.hbm_to_vmem [thread:$0]  %s21, 256, %s23, [#allocation3], 128, 128, 8
    $region5: #{tpu_custom_call.1} parent=1 // pred_fallthru
      _
    // Predicated region
    $region6: #{tpu_custom_call.1} parent=1 // pred_check
      _
    $region7: #{tpu_custom_call.1} parent=1 // pred_check_branch
      %30 = sbr.rel (0) target = $region9
    $region8: #{tpu_custom_call.1} parent=1 // pred_region
      %32 = vsyncadd [#allocation6], 0
      %s34 = sshll.u32 %s1, 4
      %s35 = int_to_ptr.hbm [resolvable:$true] %s34
      %s36 = sshll.u32 [#allocation5], 4
      %s37 = int_to_ptr.vmem [resolvable:$true] %s36
      %39 = dma.hbm_to_vmem [thread:$0]  %s35, 16, %s37, [#allocation6]
    $region9: #{tpu_custom_call.1} parent=1 // pred_fallthru
      _
    // Predicated region
    $region10: #{tpu_custom_call.1} parent=1 // pred_check
      _
    $region11: #{tpu_custom_call.1} parent=1 // pred_check_branch
      %41 = sbr.rel (0) target = $region13
    $region12: #{tpu_custom_call.1} parent=1 // pred_region
      _
    $region13: #{tpu_custom_call.1} parent=1 // pred_fallthru
      _
    // Predicated region
    $region14: #{tpu_custom_call.1} parent=1 // pred_check
      _
    $region15: #{tpu_custom_call.1} parent=1 // pred_check_branch
      %43 = sbr.rel (0) target = $region17
    $region16: #{tpu_custom_call.1} parent=1 // pred_region
      %45 = vsyncadd [#allocation6], 0
      %s46 = sshll.u32 %s3, 4
      %s47 = int_to_ptr.hbm [resolvable:$true] %s46
      %s48 = sshll.u32 [#allocation7], 4
      %s49 = int_to_ptr.vmem [resolvable:$true] %s48
      %54 = dma.hbm_to_vmem [thread:$0]  %s47, 512, %s49, [#allocation6], 128, 128, 8
    $region17: #{tpu_custom_call.1} parent=1 // pred_fallthru
      _
    // Predicated region
    $region18: #{tpu_custom_call.1} parent=1 // pred_check
      _
    $region19: #{tpu_custom_call.1} parent=1 // pred_check_branch
      %56 = sbr.rel (0) target = $region21
    $region20: #{tpu_custom_call.1} parent=1 // pred_region
      _
    $region21: #{tpu_custom_call.1} parent=1 // pred_fallthru
      _
    // Predicated region
    $region22: #{tpu_custom_call.1} parent=1 // pred_check
      _
    $region23: #{tpu_custom_call.1} parent=1 // pred_check_branch
      %58 = sbr.rel (0) target = $region25
    $region24: #{tpu_custom_call.1} parent=1 // pred_region
      %60 = vsyncadd [#allocation9], 0
      %s61 = sshll.u32 %s5, 4
      %s62 = int_to_ptr.hbm [resolvable:$true] %s61
      %s63 = sshll.u32 [#allocation8], 4
      %s64 = int_to_ptr.vmem [resolvable:$true] %s63
      %69 = dma.hbm_to_vmem [thread:$0]  %s62, 2048, %s64, [#allocation9], 128, 128, 8
    $region25: #{tpu_custom_call.1} parent=1 // pred_fallthru
      _
    // Predicated region
    $region26: #{tpu_custom_call.1} parent=1 // pred_check
      _
    $region27: #{tpu_custom_call.1} parent=1 // pred_check_branch
      %71 = sbr.rel (0) target = $region29
    $region28: #{tpu_custom_call.1} parent=1 // pred_region
      _
    $region29: #{tpu_custom_call.1} parent=1 // pred_fallthru
      _
    // Predicated region
    $region30: #{tpu_custom_call.1} parent=1 // pred_check
      _
    $region31: #{tpu_custom_call.1} parent=1 // pred_check_branch
      %73 = sbr.rel (0) target = $region33
    $region32: #{tpu_custom_call.1} parent=1 // pred_region
      %75 = dma.done [#allocation3], 256
    $region33: #{tpu_custom_call.1} parent=1 // pred_fallthru
      _
    // Predicated region
    $region34: #{tpu_custom_call.1} parent=1 // pred_check
      _
    $region35: #{tpu_custom_call.1} parent=1 // pred_check_branch
      %77 = sbr.rel (0) target = $region37
    $region36: #{tpu_custom_call.1} parent=1 // pred_region
      %79 = dma.done [#allocation6], 16
    $region37: #{tpu_custom_call.1} parent=1 // pred_fallthru
      _
    // Predicated region
    $region38: #{tpu_custom_call.1} parent=1 // pred_check
      _
    $region39: #{tpu_custom_call.1} parent=1 // pred_check_branch
      %81 = sbr.rel (0) target = $region41
    $region40: #{tpu_custom_call.1} parent=1 // pred_region
      %83 = dma.done [#allocation6], 512
    $region41: #{tpu_custom_call.1} parent=1 // pred_fallthru
      _
    // Predicated region
    $region42: #{tpu_custom_call.1} parent=1 // pred_check
      _
    $region43: #{tpu_custom_call.1} parent=1 // pred_check_branch
      %85 = sbr.rel (0) target = $region45
    $region44: #{tpu_custom_call.1} parent=1 // pred_region
      %87 = dma.done [#allocation9], 2048
    $region45: #{tpu_custom_call.1} parent=1 // pred_fallthru
      _
    %v88 = vld [vmem:[#allocation2] sm:$0xff]
    %v89 = vld [vmem:[#allocation2 + $0x8] sm:$0xff]
    %vm90 = vcmask 261120
    %v91 = vsel %vm90, %v88, 0.0
    %92 = vadd.xlane.f32.xlu0 %v91
    %v93 = vpop.xlane.xlu0 %92
    %v94 = vsel %vm90, %v89, 0.0
    %95 = vadd.xlane.f32.xlu0 %v94
    %v96 = vpop.xlane.xlu0 %95
    %v97 = vmul.f32 %v88, %v88
    %v98 = vmul.f32 %v89, %v89
    %v99 = vsel %vm90, %v97, 0.0
    %100 = vadd.xlane.f32.xlu0 %v99
    %v101 = vpop.xlane.xlu0 %100
    %v102 = vsel %vm90, %v98, 0.0
    %103 = vadd.xlane.f32.xlu0 %v102
    %v104 = vpop.xlane.xlu0 %103
    %v105 = vmul.f32 %v93, 0.03125
    %v106 = vmul.f32 %v96, 0.03125
    %v107 = vmul.f32 %v101, 0.03125
    %v108 = vmul.f32 %v104, 0.03125
    %v109 = vmul.f32 %v105, %v105
    %v110 = vmul.f32 %v106, %v106
    %v111 = vsub.f32 %v107, %v109
    %v112 = vsub.f32 %v108, %v110
    %v113 = vmax.f32 %v111, 0.0
    %v114 = vmax.f32 %v112, 0.0
    %v115 = vadd.f32 %v113, 1e-05
    %v116 = vadd.f32 %v114, 1e-05
    %v117 = vrsqrt.pop %v115
    %v118 = vmul.f32 %v117, %v115
    %v119 = vmul.f32 %v118, %v117
    %v120 = vmul.f32 0.5, %v119
    %v121 = vsub.f32 1.5, %v120
    %v122 = vmul.f32 %v117, %v121
    %vm123 = vweird.f32 %v115
    %vm124 = vweird.f32 %v117
    %vm125 = vmor %vm123, %vm124
    %v126 = vsel %vm125, %v117, %v122
    %v127 = vrsqrt.pop %v116
    %v128 = vmul.f32 %v127, %v116
    %v129 = vmul.f32 %v128, %v127
    %v130 = vmul.f32 0.5, %v129
    %v131 = vsub.f32 1.5, %v130
    %v132 = vmul.f32 %v127, %v131
    %vm133 = vweird.f32 %v116
    %vm134 = vweird.f32 %v127
    %vm135 = vmor %vm133, %vm134
    %v136 = vsel %vm135, %v127, %v132
    %v137 = vsub.f32 %v88, %v105
    %v138 = vsub.f32 %v89, %v106
    %v139 = vmul.f32 %v137, %v126
    %v140 = vmul.f32 %v138, %v136
    %v141 = vld [vmem:[#allocation5] sm:$0x1]
    %v143 = vperm.slane %v141, 0
    %v145 = vmul.f32 %v139, %v143
    %v146 = vmul.f32 %v140, %v143
    %v147 = vld [vmem:[%s2] sm:$0x1]
    %v149 = vperm.slane %v147, 0
    %v151 = vadd.f32 %v145, %v149
    %v152 = vadd.f32 %v146, %v149
    %v153 = vld [vmem:[#allocation7] sm:$0xff]
    %v154 = vld [vmem:[#allocation7 + $0x8] sm:$0xff]
    %v155 = vld [vmem:[#allocation7 + $0x10] sm:$0xff]
    %v156 = vld [vmem:[#allocation7 + $0x18] sm:$0xff]
    %v157 = vld [vmem:[%s4] sm:$0x1]
    %v159 = vperm.slane %v157, 0
    %v162 = vsel %vm90, %v151, 0
    %v165 = vsel %vm90, %v152, 0
    %167 = vmatpush.msra.mxu0 0.0
    %168 = vmatpush.msra.mxu0 0.0
    %169 = vmatpush.msra.mxu0 0.0
    %170 = vmatpush.msra.mxu0 0.0
    %171 = vmatpush.msra.mxu0 0.0
    %172 = vmatpush.msra.mxu0 0.0
    %173 = vmatpush.msra.mxu0 0.0
    %174 = vmatpush.msra.mxu0 0.0
    %175 = vmatpush.msra.mxu0 0.0
    %176 = vmatpush.msra.mxu0 0.0
    %177 = vmatpush.msra.mxu0 0.0
    %178 = vmatpush.msra.mxu0 0.0
    %179 = vmatpush.msra.mxu0 %v156
    %180 = vmatpush.msra.mxu0 %v155
    %181 = vmatpush.msra.mxu0 %v154
    %182 = vmatpush.msra.mxu0 %v153
    %183 = vmatmul.f32.gmra.mxu0 %v162
    %v184 = vpop.f32.mrf.mxu0
    %v185 = vadd.f32 %v159, %v184
    %186 = vmatmul.f32.gmra.mxu0 %v165
    %v187 = vpop.f32.mrf.mxu0
    %v188 = vadd.f32 %v159, %v187
    %189 = vdwg.mxu0
    %v190 = vmul.f32 %v185, %v185
    %v191 = vmul.f32 %v188, %v188
    %v192 = vmul.f32 %v185, %v190
    %v193 = vmul.f32 %v188, %v191
    %v194 = vmul.f32 %v192, 0.044715
    %v195 = vmul.f32 %v193, 0.044715
    %v196 = vadd.f32 %v185, %v194
    %v197 = vadd.f32 %v188, %v195
    %v198 = vmul.f32 %v196, 0.7978846
    %v199 = vmul.f32 %v197, 0.7978846
    %v200 = vtanh.pop %v198
    %v201 = vtanh.pop %v199
    %v202 = vadd.f32 %v200, 1.0
    %v203 = vadd.f32 %v201, 1.0
    %v204 = vmul.f32 %v202, 0.5
    %v205 = vmul.f32 %v203, 0.5
    %v206 = vmul.f32 %v185, %v204
    %v207 = vmul.f32 %v188, %v205
    %v208 = vld [vmem:[#allocation8] sm:$0xff]
    %v209 = vld [vmem:[#allocation8 + $0x8] sm:$0xff]
    %v210 = vld [vmem:[#allocation8 + $0x10] sm:$0xff]
    %v211 = vld [vmem:[#allocation8 + $0x18] sm:$0xff]
    %v212 = vld [vmem:[#allocation8 + $0x20] sm:$0xff]
    %v213 = vld [vmem:[#allocation8 + $0x28] sm:$0xff]
    %v214 = vld [vmem:[#allocation8 + $0x30] sm:$0xff]
    %v215 = vld [vmem:[#allocation8 + $0x38] sm:$0xff]
    %v216 = vld [vmem:[#allocation8 + $0x40] sm:$0xff]
    %v217 = vld [vmem:[#allocation8 + $0x48] sm:$0xff]
    %v218 = vld [vmem:[#allocation8 + $0x50] sm:$0xff]
    %v219 = vld [vmem:[#allocation8 + $0x58] sm:$0xff]
    %v220 = vld [vmem:[#allocation8 + $0x60] sm:$0xff]
    %v221 = vld [vmem:[#allocation8 + $0x68] sm:$0xff]
    %v222 = vld [vmem:[#allocation8 + $0x70] sm:$0xff]
    %v223 = vld [vmem:[#allocation8 + $0x78] sm:$0xff]
    %v224 = vld [vmem:[%s6] sm:$0x1]
    %v226 = vperm.slane %v224, 0
    %228 = vmatpush.msra.mxu0 %v223
    %229 = vmatpush.msra.mxu0 %v222
    %230 = vmatpush.msra.mxu0 %v221
    %231 = vmatpush.msra.mxu0 %v220
    %232 = vmatpush.msra.mxu0 %v219
    %233 = vmatpush.msra.mxu0 %v218
    %234 = vmatpush.msra.mxu0 %v217
    %235 = vmatpush.msra.mxu0 %v216
    %236 = vmatpush.msra.mxu0 %v215
    %237 = vmatpush.msra.mxu0 %v214
    %238 = vmatpush.msra.mxu0 %v213
    %239 = vmatpush.msra.mxu0 %v212
    %240 = vmatpush.msra.mxu0 %v211
    %241 = vmatpush.msra.mxu0 %v210
    %242 = vmatpush.msra.mxu0 %v209
    %243 = vmatpush.msra.mxu0 %v208
    %244 = vmatmul.f32.gmra.mxu0 %v206
    %v245 = vpop.f32.mrf.mxu0
    %v246 = vadd.f32 %v226, %v245
    %247 = vmatmul.f32.gmra.mxu0 %v207
    %v248 = vpop.f32.mrf.mxu0
    %v249 = vadd.f32 %v226, %v248
    %250 = vdwg.mxu0
    %251 = vst [vmem:[#allocation10] sm:$0xff] %v246
    %252 = vst [vmem:[#allocation10 + $0x8] sm:$0xff] %v249
    // Predicated region
    $region46: #{tpu_custom_call.1} parent=1 // pred_check
      _
    $region47: #{tpu_custom_call.1} parent=1 // pred_check_branch
      %254 = sbr.rel (0) target = $region49
    $region48: #{tpu_custom_call.1} parent=1 // pred_region
      %256 = vsyncadd [#allocation4], 0
      %s257 = sshll.u32 [#allocation10], 4
      %s258 = int_to_ptr.vmem [resolvable:$true] %s257
      %s259 = sshll.u32 %s7, 4
      %s260 = int_to_ptr.hbm [resolvable:$true] %s259
      %265 = dma.vmem_to_hbm [thread:$0]  %s258, 256, %s260, [#allocation4], 128, 128, 8
    $region49: #{tpu_custom_call.1} parent=1 // pred_fallthru
      _
    // Predicated region
    $region50: #{tpu_custom_call.1} parent=1 // pred_check
      _
    $region51: #{tpu_custom_call.1} parent=1 // pred_check_branch
      %267 = sbr.rel (0) target = $region53
    $region52: #{tpu_custom_call.1} parent=1 // pred_region
      %269 = dma.done [#allocation4], 256
    $region53: #{tpu_custom_call.1} parent=1 // pred_fallthru
      _
    %270 = vsyncpa [#allocation3], 1
    %271 = vsyncpa [#allocation6], 1
    %272 = vsyncpa [#allocation9], 1
    %273 = vsyncpa [#allocation4], 1

</llo_original>
